<compile_context>
chip_gen: v5e
topology: v5e:2x2
jax: 0.10.0
libtpu: 0.0.40
codegen_flags: <defaults>
</compile_context>

<pallas_src>
import math

import jax
import jax.numpy as jnp
from jax.experimental import pallas as pl
from jax.experimental.pallas import tpu as pltpu


def _ceil_div(a: int, b: int) -> int:
    return -(-a // b)


def _round_up(a: int, b: int) -> int:
    return _ceil_div(a, b) * b


_MAX_LANE_W = 4096                          # widest folded output row we build
_PIPELINE_VMEM_BYTES = 36 * 1024 * 1024     # double-buffered in+out budget
_VMEM_LIMIT_BYTES = 48 * 1024 * 1024


def _make_kernel(k: int, k_mx: int):
    """Kernel for one (tile_rows, k) distance block -> (tile_rows, lane_w) RBFs."""

    def kernel(d_ref, c_ref, o_ref):
        # d_ref: (tile_rows, k)        folded distances (f32)
        # c_ref: (k_mx + 2, lane_w)    rows [0:k_mx] = one-hot expansion matrix E,
        #                              row k_mx = tiled offsets, row k_mx+1 = tiled coeff
        # o_ref: (tile_rows, lane_w)   lane-dense output tile
        d = d_ref[...]
        off = c_ref[k_mx:k_mx + 1, :]             # (1, lane_w)
        coeff = c_ref[k_mx + 1:k_mx + 2, :]       # (1, lane_w)

        if k == 1:
            # No folding needed (n_rbf already a multiple of 128): plain broadcast.
            d_wide = d                            # (tile_rows, 1)
        else:
            if k < k_mx:
                # Pad the contraction dim to >= 8 with exact zeros
                # (the matching E rows are zero too, so this is exact).
                zeros = jnp.zeros((d.shape[0], k_mx - k), jnp.float32)
                d = jnp.concatenate([d, zeros], axis=1)
            # One-hot lane expansion on the MXU: d_wide[r, l] = d[r, l // n_rbf].
            d_wide = jnp.dot(d, c_ref[0:k_mx, :],
                             preferred_element_type=jnp.float32)

        diff = d_wide - off
        o_ref[...] = jnp.exp(coeff * (diff * diff)).astype(o_ref.dtype)

    return kernel


def gaussian_rbf_pallas(inputs, offsets, widths, *, out_dtype=None,
                        pipeline_vmem_bytes: int = _PIPELINE_VMEM_BYTES):
    """Gaussian RBF expansion: returns inputs.shape + (n_rbf,)."""
    n_rbf = int(offsets.shape[0])
    orig_shape = tuple(inputs.shape)
    if out_dtype is None:
        out_dtype = inputs.dtype
    out_dtype = jnp.dtype(out_dtype)
    itemsize = out_dtype.itemsize
    row_align = 8 * max(1, 4 // itemsize)       # f32: 8, bf16: 16, fp8: 32 rows

    d = inputs.reshape(-1).astype(jnp.float32)  # (N,)
    n = int(d.shape[0])
    if n == 0:
        return jnp.zeros(orig_shape + (n_rbf,), out_dtype)

    # ---- fold factor: k distances per output row, lane_w = k*n_rbf multiple of 128.
    k = 128 // math.gcd(n_rbf, 128)
    if k * n_rbf <= _MAX_LANE_W:
        n_rbf_eff = n_rbf                       # exact lcm fold, no RBF padding
    else:
        # TODO(synk): rare awkward n_rbf -> pad the RBF axis to a multiple of 128
        # (keeps stores lane-dense; the padded columns are sliced off below).
        k = 1
        n_rbf_eff = _round_up(n_rbf, 128)
    lane_w = k * n_rbf_eff
    k_mx = max(k, 8)                            # MXU contraction dim (>= 8)

    # ---- fused constants: [E one-hot expansion ; tiled offsets ; tiled coeff].
    off = offsets.reshape(-1).astype(jnp.float32)
    wid = widths.reshape(-1).astype(jnp.float32)
    if n_rbf_eff != n_rbf:
        off = jnp.pad(off, (0, n_rbf_eff - n_rbf))
        wid = jnp.pad(wid, (0, n_rbf_eff - n_rbf), constant_values=1.0)
    coeff = -0.5 / (wid * wid)
    lane_group = jnp.arange(lane_w, dtype=jnp.int32) // n_rbf_eff
    e = (lane_group[None, :] == jnp.arange(k_mx, dtype=jnp.int32)[:, None])
    consts = jnp.concatenate(
        [e.astype(jnp.float32),
         jnp.tile(off, k)[None, :],
         jnp.tile(coeff, k)[None, :]],
        axis=0)                                 # (k_mx + 2, lane_w)

    # ---- fold distances; pad N only up to a multiple of k (and one row minimum).
    n_pad = max(_round_up(n, k), k * row_align)
    if n_pad != n:
        d = jnp.pad(d, (0, n_pad - n))
    n_rows = n_pad // k
    d2 = d.reshape(n_rows, k)

    # ---- tile sizing.  The (tile_rows, k) f32 distance block is lane-padded to
    # 128 lanes in VMEM (tile_rows*512 B per buffer) -> account for it explicitly.
    in_row_vmem = 128 * 4
    out_row_vmem = lane_w * itemsize
    const_vmem = 2 * _round_up(k_mx + 2, 8) * lane_w * 4
    budget = pipeline_vmem_bytes - const_vmem
    tile_rows = budget // (2 * (in_row_vmem + out_row_vmem))
    tile_rows = max(row_align, (tile_rows // row_align) * row_align)
    # Never larger than the (row-aligned) problem ...
    tile_rows = min(tile_rows, max(row_align, (n_rows // row_align) * row_align))
    # ... and >= 2 grid steps when possible so v7x can split the parallel axis.
    if n_rows >= 2 * row_align:
        tile_rows = min(tile_rows, _round_up(_ceil_div(n_rows, 2), row_align))
    steps = _ceil_div(n_rows, tile_rows)
    if steps > 1 and steps % 2 == 1:            # balance the two v7x TensorCores
        tile_rows = _round_up(_ceil_div(n_rows, steps + 1), row_align)
        steps = _ceil_div(n_rows, tile_rows)

    cost = pl.CostEstimate(
        flops=int(n_rows) * lane_w * (2 * k_mx + 3),
        transcendentals=int(n_rows) * lane_w,
        bytes_accessed=int(n_rows) * k * 4 + int(consts.size) * 4
        + int(n_rows) * lane_w * itemsize,
    )

    out = pl.pallas_call(
        _make_kernel(k, k_mx),
        out_shape=jax.ShapeDtypeStruct((n_rows, lane_w), out_dtype),
        grid_spec=pltpu.PrefetchScalarGridSpec(
            num_scalar_prefetch=0,
            grid=(steps,),
            in_specs=[
                pl.BlockSpec((tile_rows, k), lambda i: (i, 0)),       # distances
                pl.BlockSpec((k_mx + 2, lane_w), lambda i: (0, 0)),   # constants
            ],
            out_specs=pl.BlockSpec((tile_rows, lane_w), lambda i: (i, 0)),
        ),
        compiler_params=pltpu.CompilerParams(
            dimension_semantics=("parallel",),
            vmem_limit_bytes=_VMEM_LIMIT_BYTES,
        ),
        cost_estimate=cost,
    )(d2, consts)

    # (n_rows, k*n_rbf) row-major is byte-identical to (n_pad, n_rbf) row-major.
    if n_rbf_eff != n_rbf:
        out = out[:n, :n_rbf]                   # rare fallback path only
    elif n_pad != n:
        out = out.reshape(-1)[: n * n_rbf]      # only when N % k != 0
    return out.reshape(orig_shape + (n_rbf,))


def make_gaussian_rbf_params(n_rbf: int, cutoff: float, start: float = 0.0):
    """Deterministic parameter init matching GaussianRBF.__init__."""
    offsets = jnp.linspace(start, cutoff, n_rbf, dtype=jnp.float32)
    if n_rbf > 1:
        width = jnp.abs(offsets[1] - offsets[0])
    else:
        width = jnp.asarray(cutoff, jnp.float32)
    widths = width * jnp.ones_like(offsets)
    return offsets, widths


def _reference(inputs, offsets, widths):
    coeff = -0.5 / (widths ** 2)
    diff = inputs[..., None] - offsets
    return jnp.exp(coeff * diff * diff)


if __name__ == "__main__":
    key = jax.random.PRNGKey(0)
    k1, k2, k3 = jax.random.split(key, 3)
    cutoff = 5.0

    # Case 1: n_rbf=32 (k=4 fold, lane_w=128), N=2*64=128 (multiple of k).
    n_rbf = 32
    offsets, widths = make_gaussian_rbf_params(n_rbf, cutoff)
    x1 = jax.random.uniform(k1, (2, 64), dtype=jnp.float32, minval=0.0, maxval=cutoff)
    y1 = jax.block_until_ready(gaussian_rbf_pallas(x1, offsets, widths))
    r1 = _reference(x1, offsets, widths)
    assert y1.shape == (2, 64, n_rbf), y1.shape
    assert jnp.allclose(y1, r1, atol=1e-5, rtol=1e-5), float(jnp.max(jnp.abs(y1 - r1)))

    # Case 2: ragged N=150 (not a multiple of k=4) -> pad + epilogue-slice path,
    # plus a ragged last grid block (write-clipped boundary).
    x2 = jax.random.uniform(k2, (3, 50), dtype=jnp.float32, minval=0.0, maxval=cutoff)
    y2 = jax.block_until_ready(gaussian_rbf_pallas(x2, offsets, widths))
    r2 = _reference(x2, offsets, widths)
    assert y2.shape == (3, 50, n_rbf), y2.shape
    assert jnp.allclose(y2, r2, atol=1e-5, rtol=1e-5), float(jnp.max(jnp.abs(y2 - r2)))

    # Case 3: n_rbf=20 (does not divide 128 -> lcm fold k=32, lane_w=640).
    n_rbf3 = 20
    offsets3, widths3 = make_gaussian_rbf_params(n_rbf3, cutoff)
    x3 = jax.random.uniform(k3, (4, 64), dtype=jnp.float32, minval=0.0, maxval=cutoff)
    y3 = jax.block_until_ready(gaussian_rbf_pallas(x3, offsets3, widths3))
    r3 = _reference(x3, offsets3, widths3)
    assert y3.shape == (4, 64, n_rbf3), y3.shape
    assert jnp.allclose(y3, r3, atol=1e-5, rtol=1e-5), float(jnp.max(jnp.abs(y3 - r3)))

    print("KERNEL_OK")
</pallas_src>

<mosaic_0001>
module attributes {stable_mosaic.version = 11 : i64} {
  func.func @kernel(%arg0: i32, %arg1: memref<16x4xf32, #tpu.memory_space<vmem>>, %arg2: memref<10x128xf32, #tpu.memory_space<vmem>>, %arg3: memref<16x128xf32, #tpu.memory_space<vmem>>) attributes {dimension_semantics = [#tpu.dimension_semantics<parallel>], iteration_bounds = array<i64: 2>, scalar_prefetch = 0 : i64, scratch_operands = 0 : i64, tpu.core_type = #tpu.core_type<tc>, window_params = [{transform_indices = @transform_0, window_bounds = array<i64: 16, 4>}, {pipeline_mode = #tpu.pipeline_mode<synchronous>, transform_indices = @transform_1, window_bounds = array<i64: 10, 128>}, {transform_indices = @transform_2, window_bounds = array<i64: 16, 128>}]} {
    %c0 = arith.constant 0 : index
    %c0_0 = arith.constant 0 : index
    %0 = vector.load %arg1[%c0, %c0_0] : memref<16x4xf32, #tpu.memory_space<vmem>>, vector<16x4xf32>
    %c8 = arith.constant 8 : index
    %c0_1 = arith.constant 0 : index
    %1 = vector.load %arg2[%c8, %c0_1] : memref<10x128xf32, #tpu.memory_space<vmem>>, vector<1x128xf32>
    %c9 = arith.constant 9 : index
    %c0_2 = arith.constant 0 : index
    %2 = vector.load %arg2[%c9, %c0_2] : memref<10x128xf32, #tpu.memory_space<vmem>>, vector<1x128xf32>
    %cst = arith.constant 0.000000e+00 : f32
    %3 = vector.broadcast %cst : f32 to vector<16x4xf32>
    %4 = tpu.concatenate %0, %3 in 1 : vector<16x4xf32>, vector<16x4xf32> -> vector<16x8xf32>
    %c0_3 = arith.constant 0 : index
    %c0_4 = arith.constant 0 : index
    %5 = vector.load %arg2[%c0_3, %c0_4] : memref<10x128xf32, #tpu.memory_space<vmem>>, vector<8x128xf32>
    %cst_5 = arith.constant dense<0.000000e+00> : vector<16x128xf32>
    %6 = tpu.matmul %4, %5, %cst_5 {dimension_numbers = #tpu.dot_dimension_numbers<[1], [0], [0], [1], [0, 0, 1, 1], [], []>} : vector<16x8xf32>, vector<8x128xf32>, vector<16x128xf32> -> vector<16x128xf32>
    %7 = vector.broadcast %1 : vector<1x128xf32> to vector<16x128xf32>
    %8 = arith.subf %6, %7 : vector<16x128xf32>
    %9 = arith.mulf %8, %8 : vector<16x128xf32>
    %10 = vector.broadcast %2 : vector<1x128xf32> to vector<16x128xf32>
    %11 = arith.mulf %10, %9 : vector<16x128xf32>
    %12 = math.exp %11 : vector<16x128xf32>
    %c0_6 = arith.constant 0 : index
    %c0_7 = arith.constant 0 : index
    %13 = vector.load %arg3[%c0_6, %c0_7] : memref<16x128xf32, #tpu.memory_space<vmem>>, vector<16x128xf32>
    tpu.vector_store %arg3[%c0_6, %c0_7], %12 {strides = array<i32>} : memref<16x128xf32, #tpu.memory_space<vmem>>, vector<16x128xf32>,
    return
  }
  func.func @transform_0(%arg0: i32) -> (i32, i32) {
    %c0_i32 = arith.constant 0 : i32
    %c0_i32_0 = arith.constant 0 : i32
    return %arg0, %c0_i32 : i32, i32
  }
  func.func @transform_1(%arg0: i32) -> (i32, i32) {
    %c0_i32 = arith.constant 0 : i32
    %c0_i32_0 = arith.constant 0 : i32
    %c0_i32_1 = arith.constant 0 : i32
    return %c0_i32, %c0_i32_0 : i32, i32
  }
  func.func @transform_2(%arg0: i32) -> (i32, i32) {
    %c0_i32 = arith.constant 0 : i32
    %c0_i32_0 = arith.constant 0 : i32
    return %arg0, %c0_i32 : i32, i32
  }
}

</mosaic_0001>

<llo_original>
// kernel: tpu_custom_call.1
$region0: #{tpu_custom_call.1}
  #allocation0 [shape = 'u32[]', space=smem, size = 0x4, offset = 0x4, fixed_abs, tag = 'smem constant byte address 0x4 - core index']
  #allocation1 [shape = 'u32[72,128]{1,0:T(1,128)}', space=vmem, size = 0x9000, scoped, tag = 'internal scratch']
  %s0 = inlined_call_operand.vmem [shape: f32[32,4], index: 0, kind: input, shape index: {}]
  %s1 = inlined_call_operand.vmem [shape: f32[10,128], index: 1, kind: input, shape index: {}]
  %s2 = inlined_call_operand.hbm [shape: f32[32,128], index: 2, kind: output, shape index: {}]
  %s3 = sld [smem:[#allocation0]]
  $region41: #{tpu_custom_call.1} parent=0
    _
  %s5 = ssub.s32 1, %s3
  %s6 = scalar_select 0, %s5, %s3
  $region1: #{tpu_custom_call.1} parent=0
    #allocation2 [shape = 'u8[16384]{0}', space=vmem, size = 0x4000, scoped, tag = 'output window, operand 0']
    #allocation3 [shape = 's32[2]{0}', space=sflag, size = 0x8, scoped, tag = 'scoped memory for tpu_custom_call.1']
    %7 = vsyncpa [#allocation3], 0
    %s8 = scalar_lea.sflag [#allocation3], 1
    %9 = vsyncpa %s8, 0
    loop: start=0, step=1, limit=4
    $region2: #{tpu_custom_call.1} parent=1 // loop_pre_header
      _
    $region3: #{tpu_custom_call.1} parent=1 // loop_header
      %s11 = sphi 0, %s15
      %p12 = scmp.ge.s32.totalorder %s11, 4
      %s21 = sphi 0, %s23
      %s24 = sphi 0, %s21
      %s25 = sphi 0, %s24
      %s41 = sphi 0, %s25
      %s45 = sphi 0, %s45
      %s47 = sphi 0, %s45
      %s48 = sphi 0, %s47
      %s62 = sphi 0, %s48
      %s68 = sphi 0, %s70
      %s71 = sphi 0, %s68
      %s72 = sphi 0, %s71
      %s88 = sphi 0, %s72
    $region4: #{tpu_custom_call.1} parent=1 // loop_header_branch
      %14 = sbr.rel (%p12) target = $region8
    $region5: #{tpu_custom_call.1} parent=1 // loop_body
      %s16 = ssub.s32 %s11, 1
      %s17 = ssub.s32 %s11, 2
      %s18 = sadd.s32 %s11, 1
      %s19 = ssub.s32 %s11, %s18
      %p20 = scmp.eq.s32.totalorder %s19, 0
      %s22 = sadd.s32 %s21, 1
      %s23 = scalar_select %p20, %s21, %s22
      %p26 = pneg %p20
      %p27 = scmp.eq.s32.totalorder %s11, 1
      %p28 = por %p26, %p27
      %p29 = scmp.ne.s32.totalorder %s21, %s24
      %p30 = scmp.eq.s32.totalorder %s11, 0
      %p31 = por %p29, %p30
      %p32 = scmp.ne.s32.totalorder %s21, %s24
      %p33 = scmp.eq.s32.totalorder %s16, 1
      %p34 = por %p32, %p33
      %p35 = scmp.ne.s32.totalorder %s24, %s25
      %p36 = scmp.eq.s32.totalorder %s16, 0
      %p37 = por %p35, %p36
      %p38 = scmp.ne.s32.totalorder %s24, %s25
      %p39 = scmp.eq.s32.totalorder %s17, 1
      %p40 = por %p38, %p39
      %p42 = scmp.ne.s32.totalorder %s25, %s41
      %p43 = scmp.eq.s32.totalorder %s17, 0
      %p44 = por %p42, %p43
      %s46 = sadd.s32 %s45, 1
      %p49 = scmp.eq.s32.totalorder %s11, 1
      %p50 = scmp.ne.s32.totalorder %s45, %s47
      %p51 = scmp.eq.s32.totalorder %s11, 0
      %p52 = por %p50, %p51
      %p53 = scmp.ne.s32.totalorder %s45, %s47
      %p54 = scmp.eq.s32.totalorder %s16, 1
      %p55 = por %p53, %p54
      %p56 = scmp.ne.s32.totalorder %s47, %s48
      %p57 = scmp.eq.s32.totalorder %s16, 0
      %p58 = por %p56, %p57
      %p59 = scmp.ne.s32.totalorder %s47, %s48
      %p60 = scmp.eq.s32.totalorder %s17, 1
      %p61 = por %p59, %p60
      %p63 = scmp.ne.s32.totalorder %s48, %s62
      %p64 = scmp.eq.s32.totalorder %s17, 0
      %p65 = por %p63, %p64
      %s66 = ssub.s32 %s11, %s18
      %p67 = scmp.eq.s32.totalorder %s66, 0
      %s69 = sadd.s32 %s68, 1
      %s70 = scalar_select %p67, %s68, %s69
      %p73 = pneg %p67
      %p74 = scmp.eq.s32.totalorder %s11, 1
      %p75 = por %p73, %p74
      %p76 = scmp.ne.s32.totalorder %s68, %s71
      %p77 = scmp.eq.s32.totalorder %s11, 0
      %p78 = por %p76, %p77
      %p79 = scmp.ne.s32.totalorder %s68, %s71
      %p80 = scmp.eq.s32.totalorder %s16, 1
      %p81 = por %p79, %p80
      %p82 = scmp.ne.s32.totalorder %s71, %s72
      %p83 = scmp.eq.s32.totalorder %s16, 0
      %p84 = por %p82, %p83
      %p85 = scmp.ne.s32.totalorder %s71, %s72
      %p86 = scmp.eq.s32.totalorder %s17, 1
      %p87 = por %p85, %p86
      %p89 = scmp.ne.s32.totalorder %s72, %s88
      %p90 = scmp.eq.s32.totalorder %s17, 0
      %p91 = por %p89, %p90
      %p92 = scmp.le.s32.totalorder 1, %s11
      %p93 = scmp.lt.s32.totalorder %s11, 3
      %p94 = pnand %p92, %p93
      %p95 = pneg %p94
      // Predicated region
      $region9: #{tpu_custom_call.1} parent=5 // pred_check
        _
      $region10: #{tpu_custom_call.1} parent=5 // pred_check_branch
        %97 = sbr.rel (%p94) target = $region12
      $region11: #{tpu_custom_call.1} parent=5 // pred_region
        %s98 = ssub.s32 %s11, 1
        // Predicated region
        $region13: #{tpu_custom_call.1} parent=11 // pred_check
          %p99 = pneg %p58
        $region14: #{tpu_custom_call.1} parent=11 // pred_check_branch
          %101 = sbr.rel (%p99) target = $region16
        $region15: #{tpu_custom_call.1} parent=11 // pred_region
          _
        $region16: #{tpu_custom_call.1} parent=11 // pred_fallthru
          _
      $region12: #{tpu_custom_call.1} parent=5 // pred_fallthru
        _
      %p102 = scmp.lt.s32.totalorder %s11, 2
      // Predicated region
      $region17: #{tpu_custom_call.1} parent=5 // pred_check
        %p103 = pneg %p102
      $region18: #{tpu_custom_call.1} parent=5 // pred_check_branch
        %105 = sbr.rel (%p103) target = $region20
      $region19: #{tpu_custom_call.1} parent=5 // pred_region
        // Predicated region
        $region21: #{tpu_custom_call.1} parent=19 // pred_check
          %p106 = pneg %p31
        $region22: #{tpu_custom_call.1} parent=19 // pred_check_branch
          %108 = sbr.rel (%p106) target = $region24
        $region23: #{tpu_custom_call.1} parent=19 // pred_region
          %s109 = smul.u32 2, %s11
          %p110 = scmp.lt.s32.totalorder %s109, 3
          %s111 = scalar_select %p110, %s109, 3
          %s112 = smul.addr %s111, 8
          %s113 = scalar_lea.vmem %s0, %s112
          %s114 = smul.u32 2, %s11
        $region24: #{tpu_custom_call.1} parent=19 // pred_fallthru
          _
      $region20: #{tpu_custom_call.1} parent=5 // pred_fallthru
        _
      %p115 = scmp.le.s32.totalorder 1, %s11
      %p116 = scmp.lt.s32.totalorder %s11, 3
      %p117 = pnand %p115, %p116
      %p118 = pneg %p117
      // Predicated region
      $region25: #{tpu_custom_call.1} parent=5 // pred_check
        _
      $region26: #{tpu_custom_call.1} parent=5 // pred_check_branch
        %120 = sbr.rel (%p117) target = $region28
      $region27: #{tpu_custom_call.1} parent=5 // pred_region
        %s121 = ssub.s32 %s11, 1
        %s122 = smul.u32 2, %s16
        %p123 = scmp.lt.s32.totalorder %s122, 3
        %s124 = scalar_select %p123, %s122, 3
        %s125 = smul.addr %s124, 8
        %s126 = scalar_lea.vmem %s0, %s125
        %p127 = pneg %p37
        %p128 = pneg %p34
        %p129 = pneg %p58
        %p130 = pneg %p55
        %p131 = pneg %p84
        %p132 = pneg %p81
        %s133 = sand.u32 %s71, 1
        %s134 = scalar_lea.sflag [#allocation3], %s133
        %s135 = sand.u32 %s71, 1
        %s136 = smul.addr %s135, 16
        %s137 = scalar_lea.vmem [#allocation2], %s136
        %s138 = smul.u32 2, %s16
        %p139 = scmp.lt.s32.totalorder %s138, 3
        %s140 = scalar_select %p139, %s138, 3
        %s141 = smul.addr %s140, 8
        %s142 = scalar_lea.vmem %s0, %s141
        %s143 = smul.u32 2, %s16
        %s144 = smul.u32 2, %s16
        %v145 = vld [vmem:[%s142] sm:$0xff]
        %v146 = vld [vmem:[%s142 + $0x8] sm:$0xff]
        %v147 = vld [vmem:[%s1 + $0x8] sm:$0x1]
        %v148 = vld [vmem:[%s1 + $0x9] sm:$0x1]
        %vm149 = vcmask 31744
        %v150 = vsel %vm149, %v145, 0.0
        %v151 = vsel %vm149, %v146, 0.0
        %v152 = vld [vmem:[%s1] sm:$0xff]
        %vm153 = vcmask 64512
        %v155 = vsel %vm153, %v150, 0
        %v158 = vsel %vm153, %v151, 0
        %160 = vmatpush.msra.mxu0 0.0
        %161 = vmatpush.msra.mxu0 0.0
        %162 = vmatpush.msra.mxu0 0.0
        %163 = vmatpush.msra.mxu0 0.0
        %164 = vmatpush.msra.mxu0 0.0
        %165 = vmatpush.msra.mxu0 0.0
        %166 = vmatpush.msra.mxu0 0.0
        %167 = vmatpush.msra.mxu0 0.0
        %168 = vmatpush.msra.mxu0 0.0
        %169 = vmatpush.msra.mxu0 0.0
        %170 = vmatpush.msra.mxu0 0.0
        %171 = vmatpush.msra.mxu0 0.0
        %172 = vmatpush.msra.mxu0 0.0
        %173 = vmatpush.msra.mxu0 0.0
        %174 = vmatpush.msra.mxu0 0.0
        %175 = vmatpush.msra.mxu0 %v152
        %176 = vmatmul.f32.gmra.mxu0 %v155
        %v177 = vpop.f32.mrf.mxu0
        %v178 = vadd.f32 0.0, %v177
        %179 = vmatmul.f32.gmra.mxu0 %v158
        %v180 = vpop.f32.mrf.mxu0
        %v181 = vadd.f32 0.0, %v180
        %182 = vdwg.mxu0
        %v183 = vperm.slane %v147, 0
        %v184 = vsub.f32 %v178, %v183
        %v185 = vsub.f32 %v181, %v183
        %v186 = vmul.f32 %v184, %v184
        %v187 = vmul.f32 %v185, %v185
        %v188 = vperm.slane %v148, 0
        %v189 = vmul.f32 %v188, %v186
        %v190 = vmul.f32 %v188, %v187
        %v191 = vmul.f32 %v189, 1.442695
        %v192 = vpow.pop %v191
        %v193 = vmul.f32 %v190, 1.442695
        %v194 = vpow.pop %v193
        %195 = vst [vmem:[%s137] sm:$0xff] %v192
        %196 = vst [vmem:[%s137 + $0x8] sm:$0xff] %v194
        %s197 = sand.u32 %s71, 1
        %s198 = scalar_lea.sflag [#allocation3], %s197
        %s199 = sand.u32 %s71, 1
        %s200 = smul.addr %s199, 16
        %s201 = scalar_lea.vmem [#allocation2], %s200
        // Predicated region
        $region29: #{tpu_custom_call.1} parent=27 // pred_check
          %p202 = pneg %p81
        $region30: #{tpu_custom_call.1} parent=27 // pred_check_branch
          %204 = sbr.rel (%p202) target = $region32
        $region31: #{tpu_custom_call.1} parent=27 // pred_region
          %s205 = smul.u32 2, %s16
          %207 = vsyncadd %s198, 0
          %s208 = smul.addr %s205, 8
          %s209 = scalar_lea.hbm %s2, %s208
          %s210 = sshll.u32 %s201, 4
          %s211 = int_to_ptr.vmem [resolvable:$true] %s210
          %s212 = sshll.u32 %s209, 4
          %s213 = int_to_ptr.hbm [resolvable:$true] %s212
          %218 = dma.vmem_to_hbm [thread:$0]  %s211, 256, %s213, %s198, 128, 128, 8
        $region32: #{tpu_custom_call.1} parent=27 // pred_fallthru
          _
      $region28: #{tpu_custom_call.1} parent=5 // pred_fallthru
        _
      %p219 = scmp.le.s32.totalorder 2, %s11
      // Predicated region
      $region33: #{tpu_custom_call.1} parent=5 // pred_check
        %p220 = pneg %p219
      $region34: #{tpu_custom_call.1} parent=5 // pred_check_branch
        %222 = sbr.rel (%p220) target = $region36
      $region35: #{tpu_custom_call.1} parent=5 // pred_region
        %s223 = ssub.s32 %s11, 2
        // Predicated region
        $region37: #{tpu_custom_call.1} parent=35 // pred_check
          %p224 = pneg %p87
        $region38: #{tpu_custom_call.1} parent=35 // pred_check_branch
          %226 = sbr.rel (%p224) target = $region40
        $region39: #{tpu_custom_call.1} parent=35 // pred_region
          %s227 = sand.u32 %s72, 1
          %s228 = scalar_lea.sflag [#allocation3], %s227
          %s229 = sand.u32 %s72, 1
          %s230 = smul.addr %s229, 16
          %s231 = scalar_lea.vmem [#allocation2], %s230
          %233 = dma.done %s228, 256
        $region40: #{tpu_custom_call.1} parent=35 // pred_fallthru
          _
      $region36: #{tpu_custom_call.1} parent=5 // pred_fallthru
        _
    $region6: #{tpu_custom_call.1} parent=1 // loop_footer
      %s15 = sadd.s32 1, %s11
    $region7: #{tpu_custom_call.1} parent=1 // loop_footer_branch
      %10 = sbr.rel target = $region3
    $region8: #{tpu_custom_call.1} parent=1 // loop_exit
      _
    %234 = vsyncpa [#allocation3], 1
    %s235 = scalar_lea.sflag [#allocation3], 1
    %236 = vsyncpa %s235, 1

</llo_original>
